<compile_context>
chip_gen: v7x
topology: tpu7x:2x2x1
jax: 0.10.0
libtpu: 0.0.40
codegen_flags: <defaults>
</compile_context>

<pallas_src>
import jax
import jax.numpy as jnp
from jax.experimental import pallas as pl
from jax.experimental.pallas import tpu as pltpu

LANE = 128
VMEM_LIMIT_BYTES = 48 << 20   # safe on v7x (64 MiB/TC) and raises v5e/v6e default


def residual_pointwise_kernel(x_ref, w_ref, b_ref, o_ref):
    # x_ref / o_ref: (nb, C, tl) block of the (B, C, L) activations.
    # w_ref: (C, C) pointwise-conv weight (out_ch, in_ch), resident across grid.
    # b_ref: (C, 1) bias, resident; lane-broadcast sits in VALU slack (kernel is
    #        HBM-bound), so no wrapper-side bias materialization is needed.
    w = w_ref[...]
    b = b_ref[...]

    def _mix(n):
        x = x_ref[n]                                              # (C, tl)
        y = jnp.dot(w, x, preferred_element_type=jnp.float32)     # fn(x): MXU
        o_ref[n] = (y + b + x).astype(o_ref.dtype)                # + residual

    nb = x_ref.shape[0]
    if nb <= 8:
        for n in range(nb):          # short static loop -> fully unrolled
            _mix(n)
    else:
        @pl.loop(0, nb)
        def _(n):
            _mix(n)


def _choose_tiles(B, C, L, itemsize):
    """Pick (nb, tl): batches and length-columns per grid step.

    Per-step VMEM footprint (conservative):
        4 * nb*C*tl*itemsize   in + out, each double-buffered
      +     C*tl*4             f32 dot-result scratch
      + 2 * C*C*itemsize       resident weight (counted double-buffered)
    """
    avail = VMEM_LIMIT_BYTES - 2 * C * C * itemsize - (2 << 20)
    avail = max(avail, 4 << 20)
    x_cap = 8 << 20                      # single-copy x-tile cap (step overhead <10%)

    slab = C * L * itemsize              # one batch at full length

    # Batch-packing path: short sequences, or any case where a full-L batch is
    # cheap -> each DMA moves one contiguous nb*C*L region.
    if B > 1 and (L < LANE or 4 * slab + 4 * C * L <= avail // 4):
        nb = min(B,
                 max(1, (avail - 4 * C * L) // (4 * slab)),
                 max(1, x_cap // max(slab, 1)),
                 512)
        nb = max(1, min(nb, pl.cdiv(B, 2)))   # >=2 grid steps keeps both v7x TCs busy
        return nb, L
    if B == 1 and L < 2 * LANE:
        return 1, L                            # nothing useful to split

    # Length-tiling path: one batch per step, lane-dense multiple-of-128 tiles.
    per_col = 4 * C * itemsize + 4 * C         # 2x(in+out) buffers + f32 scratch
    max_tl = min(avail // per_col, x_cap // (C * itemsize))
    max_tl = max(LANE, (max_tl // LANE) * LANE)
    n_l = max(pl.cdiv(L, max_tl), 2 if B == 1 else 1)   # v7x: split when B == 1
    tl = min(max_tl, pl.cdiv(pl.cdiv(L, n_l), LANE) * LANE)
    return 1, (L if tl >= L else tl)


def residual_pointwise(x, w, b):
    """Residual(Conv1d(C, C, 1))(x) = W @ x + b + x in native NCL layout.

    x: (B, C, L); w: (C, C) (out_ch, in_ch); b: (C,). Returns (B, C, L).
    """
    B, C, L = x.shape
    itemsize = jnp.dtype(x.dtype).itemsize
    nb, tl = _choose_tiles(B, C, L, itemsize)

    b2 = b.reshape(C, 1)
    grid = (pl.cdiv(B, nb), pl.cdiv(L, tl))

    return pl.pallas_call(
        residual_pointwise_kernel,
        out_shape=jax.ShapeDtypeStruct((B, C, L), x.dtype),
        grid_spec=pltpu.PrefetchScalarGridSpec(
            num_scalar_prefetch=0,
            grid=grid,
            in_specs=[
                pl.BlockSpec((nb, C, tl), lambda bi, li: (bi, 0, li)),  # x tile
                pl.BlockSpec((C, C), lambda bi, li: (0, 0)),            # weight
                pl.BlockSpec((C, 1), lambda bi, li: (0, 0)),            # bias
            ],
            out_specs=pl.BlockSpec((nb, C, tl), lambda bi, li: (bi, 0, li)),
        ),
        compiler_params=pltpu.CompilerParams(
            dimension_semantics=("parallel", "parallel"),
            vmem_limit_bytes=VMEM_LIMIT_BYTES,
        ),
    )(x, w, b2)


if __name__ == "__main__":
    key = jax.random.PRNGKey(0)

    def reference(x, w, b):
        xf, wf, bf = (a.astype(jnp.float32) for a in (x, w, b))
        return jnp.einsum("oc,bcl->bol", wf, xf) + bf[None, :, None] + xf

    def check(B, C, L, dtype, tol):
        kx, kw, kb = jax.random.split(jax.random.fold_in(key, B * 1000 + C + L), 3)
        x = jax.random.normal(kx, (B, C, L), dtype=jnp.float32).astype(dtype)
        w = (jax.random.normal(kw, (C, C), dtype=jnp.float32) * 0.05).astype(dtype)
        b = (jax.random.normal(kb, (C,), dtype=jnp.float32) * 0.05).astype(dtype)
        out = jax.block_until_ready(residual_pointwise(x, w, b))
        ref = reference(x, w, b)
        assert out.shape == x.shape
        assert jnp.allclose(out.astype(jnp.float32), ref, atol=tol, rtol=tol), (
            f"mismatch vs reference at B={B} C={C} L={L} dtype={dtype}")

    # Small NCL shape consistent with the module's pointwise-Conv1d inner op.
    check(2, 32, 16, jnp.float32, 1e-4)    # batch-packed small-L path
    check(1, 16, 384, jnp.float32, 1e-4)   # lane-dense L tiles + ragged L tail
    check(5, 32, 64, jnp.float32, 1e-4)    # batch packing with ragged batch block
    check(4, 32, 16, jnp.bfloat16, 3e-2)   # bf16 I/O, f32 accumulation

    print("KERNEL_OK")
</pallas_src>

<mosaic_0001>
module attributes {stable_mosaic.version = 11 : i64} {
  func.func @residual_pointwise_kernel(%arg0: i32, %arg1: i32, %arg2: memref<1x32x16xf32, #tpu.memory_space<vmem>>, %arg3: memref<32x32xf32, #tpu.memory_space<vmem>>, %arg4: memref<32x1xf32, #tpu.memory_space<vmem>>, %arg5: memref<1x32x16xf32, #tpu.memory_space<vmem>>) attributes {dimension_semantics = [#tpu.dimension_semantics<parallel>, #tpu.dimension_semantics<parallel>], iteration_bounds = array<i64: 2, 1>, scalar_prefetch = 0 : i64, scratch_operands = 0 : i64, tpu.core_type = #tpu.core_type<tc>, window_params = [{transform_indices = @transform_0, window_bounds = array<i64: 1, 32, 16>}, {pipeline_mode = #tpu.pipeline_mode<synchronous>, transform_indices = @transform_1, window_bounds = array<i64: 32, 32>}, {pipeline_mode = #tpu.pipeline_mode<synchronous>, transform_indices = @transform_2, window_bounds = array<i64: 32, 1>}, {transform_indices = @transform_3, window_bounds = array<i64: 1, 32, 16>}]} {
    %c0 = arith.constant 0 : index
    %c0_0 = arith.constant 0 : index
    %0 = vector.load %arg3[%c0, %c0_0] : memref<32x32xf32, #tpu.memory_space<vmem>>, vector<32x32xf32>
    %c0_1 = arith.constant 0 : index
    %c0_2 = arith.constant 0 : index
    %1 = vector.load %arg4[%c0_1, %c0_2] : memref<32x1xf32, #tpu.memory_space<vmem>>, vector<32x1xf32>
    %c0_3 = arith.constant 0 : index
    %c0_4 = arith.constant 0 : index
    %c0_5 = arith.constant 0 : index
    %2 = vector.load %arg2[%c0_3, %c0_4, %c0_5] : memref<1x32x16xf32, #tpu.memory_space<vmem>>, vector<1x32x16xf32>
    %3 = vector.shape_cast %2 : vector<1x32x16xf32> to vector<32x16xf32>
    %cst = arith.constant dense<0.000000e+00> : vector<32x16xf32>
    %4 = tpu.matmul %0, %3, %cst {dimension_numbers = #tpu.dot_dimension_numbers<[1], [0], [0], [1], [0, 0, 1, 1], [], []>} : vector<32x32xf32>, vector<32x16xf32>, vector<32x16xf32> -> vector<32x16xf32>
    %5 = vector.broadcast %1 : vector<32x1xf32> to vector<32x16xf32>
    %6 = arith.addf %4, %5 : vector<32x16xf32>
    %7 = arith.addf %6, %3 : vector<32x16xf32>
    %c0_6 = arith.constant 0 : index
    %c0_7 = arith.constant 0 : index
    %c0_8 = arith.constant 0 : index
    %8 = vector.load %arg5[%c0_6, %c0_7, %c0_8] : memref<1x32x16xf32, #tpu.memory_space<vmem>>, vector<1x32x16xf32>
    %9 = vector.shape_cast %8 : vector<1x32x16xf32> to vector<32x16xf32>
    %10 = vector.shape_cast %7 : vector<32x16xf32> to vector<1x32x16xf32>
    tpu.vector_store %arg5[%c0_6, %c0_7, %c0_8], %10 {strides = array<i32>} : memref<1x32x16xf32, #tpu.memory_space<vmem>>, vector<1x32x16xf32>,
    return
  }
  func.func @transform_0(%arg0: i32, %arg1: i32) -> (i32, i32, i32) {
    %c0_i32 = arith.constant 0 : i32
    %c0_i32_0 = arith.constant 0 : i32
    return %arg0, %c0_i32, %arg1 : i32, i32, i32
  }
  func.func @transform_1(%arg0: i32, %arg1: i32) -> (i32, i32) {
    %c0_i32 = arith.constant 0 : i32
    %c0_i32_0 = arith.constant 0 : i32
    %c0_i32_1 = arith.constant 0 : i32
    return %c0_i32, %c0_i32_0 : i32, i32
  }
  func.func @transform_2(%arg0: i32, %arg1: i32) -> (i32, i32) {
    %c0_i32 = arith.constant 0 : i32
    %c0_i32_0 = arith.constant 0 : i32
    %c0_i32_1 = arith.constant 0 : i32
    return %c0_i32, %c0_i32_0 : i32, i32
  }
  func.func @transform_3(%arg0: i32, %arg1: i32) -> (i32, i32, i32) {
    %c0_i32 = arith.constant 0 : i32
    %c0_i32_0 = arith.constant 0 : i32
    return %arg0, %c0_i32, %arg1 : i32, i32, i32
  }
}

</mosaic_0001>

<llo_original>
// kernel: tpu_custom_call.1
$region0: #{tpu_custom_call.1}
  #allocation0 [shape = 'u32[]', space=smem, size = 0x4, offset = 0x4, fixed_abs, tag = 'smem constant byte address 0x4 - core index']
  #allocation1 [shape = 'u32[144,128]{1,0:T(1,128)}', space=vmem, size = 0x12000, scoped, tag = 'internal scratch']
  %s0 = inlined_call_operand.vmem [shape: f32[2,32,16], index: 0, kind: input, shape index: {}]
  %s1 = inlined_call_operand.vmem [shape: f32[32,32], index: 1, kind: input, shape index: {}]
  %s2 = inlined_call_operand.vmem [shape: f32[32,1], index: 2, kind: input, shape index: {}]
  %s3 = inlined_call_operand.vmem [shape: f32[2,32,16], index: 3, kind: output, shape index: {}]
  %s4 = sld [smem:[#allocation0]]
  $region45: #{tpu_custom_call.1} parent=0
    _
  %s6 = ssub.s32 1, %s4
  %s7 = scalar_select 0, %s6, %s4
  loop: start=0, step=1, limit=4
  $region2: #{tpu_custom_call.1} parent=0 // loop_pre_header
    _
  $region3: #{tpu_custom_call.1} parent=0 // loop_header
    %s9 = sphi 0, %s13
    %p10 = scmp.ge.s32.totalorder %s9, 4
    %s16 = sphi 0, %s28
    %s17 = sphi 0, %s24
    %s18 = sphi 0, %s16
    %s19 = sphi 0, %s17
    %s20 = sphi 0, %s18
    %s21 = sphi 0, %s19
    %s33 = sphi 0, %s35
    %s36 = sphi 0, %s33
    %s37 = sphi 0, %s36
    %s53 = sphi 0, %s37
    %s57 = sphi 0, %s57
    %s59 = sphi 0, %s57
    %s60 = sphi 0, %s59
    %s74 = sphi 0, %s60
    %s78 = sphi 0, %s78
    %s80 = sphi 0, %s78
    %s81 = sphi 0, %s80
    %s95 = sphi 0, %s81
    %s103 = sphi 0, %s105
    %s106 = sphi 0, %s103
    %s107 = sphi 0, %s106
    %s123 = sphi 0, %s107
  $region4: #{tpu_custom_call.1} parent=0 // loop_header_branch
    %12 = sbr.rel (%p10) target = $region8
  $region5: #{tpu_custom_call.1} parent=0 // loop_body
    %s14 = ssub.s32 %s9, 1
    %s15 = ssub.s32 %s9, 2
    %s22 = sadd.s32 1, %s17
    %p23 = scmp.ge.s32.totalorder %s22, 1
    %s24 = scalar_select %p23, 0, %s22
    %s25 = sadd.s32 1, %s16
    %s26 = scalar_select %p23, %s25, %s16
    %p27 = scmp.ge.s32.totalorder %s26, 2
    %s28 = scalar_select %p27, 0, %s26
    %s29 = ssub.s32 %s16, %s28
    %s30 = ssub.s32 %s17, %s24
    %s31 = sor.u32 %s29, %s30
    %p32 = scmp.eq.s32.totalorder %s31, 0
    %s34 = sadd.s32 %s33, 1
    %s35 = scalar_select %p32, %s33, %s34
    %p38 = pneg %p32
    %p39 = scmp.eq.s32.totalorder %s9, 1
    %p40 = por %p38, %p39
    %p41 = scmp.ne.s32.totalorder %s33, %s36
    %p42 = scmp.eq.s32.totalorder %s9, 0
    %p43 = por %p41, %p42
    %p44 = scmp.ne.s32.totalorder %s33, %s36
    %p45 = scmp.eq.s32.totalorder %s14, 1
    %p46 = por %p44, %p45
    %p47 = scmp.ne.s32.totalorder %s36, %s37
    %p48 = scmp.eq.s32.totalorder %s14, 0
    %p49 = por %p47, %p48
    %p50 = scmp.ne.s32.totalorder %s36, %s37
    %p51 = scmp.eq.s32.totalorder %s15, 1
    %p52 = por %p50, %p51
    %p54 = scmp.ne.s32.totalorder %s37, %s53
    %p55 = scmp.eq.s32.totalorder %s15, 0
    %p56 = por %p54, %p55
    %s58 = sadd.s32 %s57, 1
    %p61 = scmp.eq.s32.totalorder %s9, 1
    %p62 = scmp.ne.s32.totalorder %s57, %s59
    %p63 = scmp.eq.s32.totalorder %s9, 0
    %p64 = por %p62, %p63
    %p65 = scmp.ne.s32.totalorder %s57, %s59
    %p66 = scmp.eq.s32.totalorder %s14, 1
    %p67 = por %p65, %p66
    %p68 = scmp.ne.s32.totalorder %s59, %s60
    %p69 = scmp.eq.s32.totalorder %s14, 0
    %p70 = por %p68, %p69
    %p71 = scmp.ne.s32.totalorder %s59, %s60
    %p72 = scmp.eq.s32.totalorder %s15, 1
    %p73 = por %p71, %p72
    %p75 = scmp.ne.s32.totalorder %s60, %s74
    %p76 = scmp.eq.s32.totalorder %s15, 0
    %p77 = por %p75, %p76
    %s79 = sadd.s32 %s78, 1
    %p82 = scmp.eq.s32.totalorder %s9, 1
    %p83 = scmp.ne.s32.totalorder %s78, %s80
    %p84 = scmp.eq.s32.totalorder %s9, 0
    %p85 = por %p83, %p84
    %p86 = scmp.ne.s32.totalorder %s78, %s80
    %p87 = scmp.eq.s32.totalorder %s14, 1
    %p88 = por %p86, %p87
    %p89 = scmp.ne.s32.totalorder %s80, %s81
    %p90 = scmp.eq.s32.totalorder %s14, 0
    %p91 = por %p89, %p90
    %p92 = scmp.ne.s32.totalorder %s80, %s81
    %p93 = scmp.eq.s32.totalorder %s15, 1
    %p94 = por %p92, %p93
    %p96 = scmp.ne.s32.totalorder %s81, %s95
    %p97 = scmp.eq.s32.totalorder %s15, 0
    %p98 = por %p96, %p97
    %s99 = ssub.s32 %s16, %s28
    %s100 = ssub.s32 %s17, %s24
    %s101 = sor.u32 %s99, %s100
    %p102 = scmp.eq.s32.totalorder %s101, 0
    %s104 = sadd.s32 %s103, 1
    %s105 = scalar_select %p102, %s103, %s104
    %p108 = pneg %p102
    %p109 = scmp.eq.s32.totalorder %s9, 1
    %p110 = por %p108, %p109
    %p111 = scmp.ne.s32.totalorder %s103, %s106
    %p112 = scmp.eq.s32.totalorder %s9, 0
    %p113 = por %p111, %p112
    %p114 = scmp.ne.s32.totalorder %s103, %s106
    %p115 = scmp.eq.s32.totalorder %s14, 1
    %p116 = por %p114, %p115
    %p117 = scmp.ne.s32.totalorder %s106, %s107
    %p118 = scmp.eq.s32.totalorder %s14, 0
    %p119 = por %p117, %p118
    %p120 = scmp.ne.s32.totalorder %s106, %s107
    %p121 = scmp.eq.s32.totalorder %s15, 1
    %p122 = por %p120, %p121
    %p124 = scmp.ne.s32.totalorder %s107, %s123
    %p125 = scmp.eq.s32.totalorder %s15, 0
    %p126 = por %p124, %p125
    %p127 = scmp.le.s32.totalorder 1, %s9
    %p128 = scmp.lt.s32.totalorder %s9, 3
    %p129 = pnand %p127, %p128
    %p130 = pneg %p129
    // Predicated region
    $region9: #{tpu_custom_call.1} parent=5 // pred_check
      _
    $region10: #{tpu_custom_call.1} parent=5 // pred_check_branch
      %132 = sbr.rel (%p129) target = $region12
    $region11: #{tpu_custom_call.1} parent=5 // pred_region
      %s133 = ssub.s32 %s9, 1
      // Predicated region
      $region13: #{tpu_custom_call.1} parent=11 // pred_check
        %p134 = pneg %p70
      $region14: #{tpu_custom_call.1} parent=11 // pred_check_branch
        %136 = sbr.rel (%p134) target = $region16
      $region15: #{tpu_custom_call.1} parent=11 // pred_region
        _
      $region16: #{tpu_custom_call.1} parent=11 // pred_fallthru
        _
      // Predicated region
      $region17: #{tpu_custom_call.1} parent=11 // pred_check
        %p137 = pneg %p91
      $region18: #{tpu_custom_call.1} parent=11 // pred_check_branch
        %139 = sbr.rel (%p137) target = $region20
      $region19: #{tpu_custom_call.1} parent=11 // pred_region
        _
      $region20: #{tpu_custom_call.1} parent=11 // pred_fallthru
        _
    $region12: #{tpu_custom_call.1} parent=5 // pred_fallthru
      _
    %p140 = scmp.lt.s32.totalorder %s9, 2
    // Predicated region
    $region21: #{tpu_custom_call.1} parent=5 // pred_check
      %p141 = pneg %p140
    $region22: #{tpu_custom_call.1} parent=5 // pred_check_branch
      %143 = sbr.rel (%p141) target = $region24
    $region23: #{tpu_custom_call.1} parent=5 // pred_region
      // Predicated region
      $region25: #{tpu_custom_call.1} parent=23 // pred_check
        %p144 = pneg %p43
      $region26: #{tpu_custom_call.1} parent=23 // pred_check_branch
        %146 = sbr.rel (%p144) target = $region28
      $region27: #{tpu_custom_call.1} parent=23 // pred_region
        %p147 = scmp.lt.s32.totalorder %s16, 1
        %s148 = scalar_select %p147, %s16, 1
        %p149 = scmp.lt.s32.totalorder %s17, 0
        %s150 = scalar_select %p149, %s17, 0
        %s151 = smul.addr %s148, 4
        %s152 = sadd.s32 %s150, %s151
        %s153 = smul.addr %s152, 8
        %s154 = scalar_lea.vmem %s0, %s153
      $region28: #{tpu_custom_call.1} parent=23 // pred_fallthru
        _
    $region24: #{tpu_custom_call.1} parent=5 // pred_fallthru
      _
    %p155 = scmp.le.s32.totalorder 1, %s9
    %p156 = scmp.lt.s32.totalorder %s9, 3
    %p157 = pnand %p155, %p156
    %p158 = pneg %p157
    // Predicated region
    $region29: #{tpu_custom_call.1} parent=5 // pred_check
      _
    $region30: #{tpu_custom_call.1} parent=5 // pred_check_branch
      %160 = sbr.rel (%p157) target = $region32
    $region31: #{tpu_custom_call.1} parent=5 // pred_region
      %s161 = ssub.s32 %s9, 1
      %p162 = scmp.lt.s32.totalorder %s18, 1
      %s163 = scalar_select %p162, %s18, 1
      %p164 = scmp.lt.s32.totalorder %s19, 0
      %s165 = scalar_select %p164, %s19, 0
      %s166 = smul.addr %s163, 4
      %s167 = sadd.s32 %s165, %s166
      %s168 = smul.addr %s167, 8
      %s169 = scalar_lea.vmem %s0, %s168
      %p170 = pneg %p49
      %p171 = pneg %p46
      %p172 = pneg %p70
      %p173 = pneg %p67
      %p174 = pneg %p91
      %p175 = pneg %p88
      %p176 = pneg %p119
      %p177 = pneg %p116
      %p178 = scmp.lt.s32.totalorder %s18, 1
      %s179 = scalar_select %p178, %s18, 1
      %p180 = scmp.lt.s32.totalorder %s19, 0
      %s181 = scalar_select %p180, %s19, 0
      %s182 = smul.addr %s179, 4
      %s183 = sadd.s32 %s181, %s182
      %s184 = smul.addr %s183, 8
      %s185 = scalar_lea.vmem %s3, %s184
      %p186 = scmp.lt.s32.totalorder %s18, 1
      %s187 = scalar_select %p186, %s18, 1
      %p188 = scmp.lt.s32.totalorder %s19, 0
      %s189 = scalar_select %p188, %s19, 0
      %s190 = smul.addr %s187, 4
      %s191 = sadd.s32 %s189, %s190
      %s192 = smul.addr %s191, 8
      %s193 = scalar_lea.vmem %s0, %s192
      %p194 = scmp.lt.s32.totalorder %s18, 1
      %s195 = scalar_select %p194, %s18, 1
      %p196 = scmp.lt.s32.totalorder %s19, 0
      %s197 = scalar_select %p196, %s19, 0
      %s198 = smul.addr %s195, 4
      %s199 = sadd.s32 %s197, %s198
      %s200 = smul.addr %s199, 8
      %s201 = scalar_lea.vmem %s3, %s200
      %v202 = vld [vmem:[%s1] sm:$0xff]
      %v203 = vld [vmem:[%s1 + $0x8] sm:$0xff]
      %v204 = vld [vmem:[%s1 + $0x10] sm:$0xff]
      %v205 = vld [vmem:[%s1 + $0x18] sm:$0xff]
      %v206 = vld [vmem:[%s2] sm:$0xff]
      %v207 = vld [vmem:[%s2 + $0x8] sm:$0xff]
      %v208 = vld [vmem:[%s2 + $0x10] sm:$0xff]
      %v209 = vld [vmem:[%s2 + $0x18] sm:$0xff]
      %v210 = vld [vmem:[%s193] sm:$0xff]
      %v211 = vld [vmem:[%s193 + $0x8] sm:$0xff]
      %v212 = vld [vmem:[%s193 + $0x10] sm:$0xff]
      %v213 = vld [vmem:[%s193 + $0x18] sm:$0xff]
      %215 = vset.pattern.permute.xlu0 0
      %216 = vperm.xlu0 %215, %v206
      %v217 = vpop.permute.xlu0 %216
      %220 = vset.pattern.permute.xlu0 0
      %221 = vperm.xlu0 %220, %v207
      %v222 = vpop.permute.xlu0 %221
      %225 = vset.pattern.permute.xlu0 0
      %226 = vperm.xlu0 %225, %v208
      %v227 = vpop.permute.xlu0 %226
      %230 = vset.pattern.permute.xlu0 0
      %231 = vperm.xlu0 %230, %v209
      %v232 = vpop.permute.xlu0 %231
      %vm234 = vcmask 261120
      %v236 = vsel %vm234, %v202, 0
      %v239 = vsel %vm234, %v203, 0
      %v242 = vsel %vm234, %v204, 0
      %v245 = vsel %vm234, %v205, 0
      %247 = vmatprep.subr.mxu0 0.0
      %248 = vmatpush1.msra.mxu0 %v210
      %249 = vmatprep.subr.mxu0 0.0
      %250 = vmatpush1.msra.mxu0 %v211
      %251 = vmatprep.subr.mxu0 0.0
      %252 = vmatpush1.msra.mxu0 %v212
      %253 = vmatprep.subr.mxu0 0.0
      %254 = vmatpush1.msra.mxu0 %v213
      %255 = vmatprep.subr.mxu0 0.0
      %256 = vmatpush1.msra.mxu0 0.0
      %257 = vmatprep.subr.mxu0 0.0
      %258 = vmatpush1.msra.mxu0 0.0
      %259 = vmatprep.subr.mxu0 0.0
      %260 = vmatpush1.msra.mxu0 0.0
      %261 = vmatprep.subr.mxu0 0.0
      %262 = vmatpush1.msra.mxu0 0.0
      %263 = vmatprep.subr.mxu0 0.0
      %264 = vmatpush1.msra.mxu0 0.0
      %265 = vmatprep.subr.mxu0 0.0
      %266 = vmatpush1.msra.mxu0 0.0
      %267 = vmatprep.subr.mxu0 0.0
      %268 = vmatpush1.msra.mxu0 0.0
      %269 = vmatprep.subr.mxu0 0.0
      %270 = vmatpush1.msra.mxu0 0.0
      %271 = vmatprep.subr.mxu0 0.0
      %272 = vmatpush1.msra.mxu0 0.0
      %273 = vmatprep.subr.mxu0 0.0
      %274 = vmatpush1.msra.mxu0 0.0
      %275 = vmatprep.subr.mxu0 0.0
      %276 = vmatpush1.msra.mxu0 0.0
      %277 = vmatprep.subr.mxu0 0.0
      %278 = vmatpush1.msra.mxu0 0.0
      %279 = vmatprep.subr.mxu0 0.0
      %280 = vmatpush1.msra.mxu0 0.0
      %281 = vmatprep.subr.mxu0 0.0
      %282 = vmatpush1.msra.mxu0 0.0
      %283 = vmatprep.subr.mxu0 0.0
      %284 = vmatpush1.msra.mxu0 0.0
      %285 = vmatprep.subr.mxu0 0.0
      %286 = vmatpush1.msra.mxu0 0.0
      %287 = vmatprep.subr.mxu0 0.0
      %288 = vmatpush1.msra.mxu0 0.0
      %289 = vmatprep.subr.mxu0 0.0
      %290 = vmatpush1.msra.mxu0 0.0
      %291 = vmatprep.subr.mxu0 0.0
      %292 = vmatpush1.msra.mxu0 0.0
      %293 = vmatprep.subr.mxu0 0.0
      %294 = vmatpush1.msra.mxu0 0.0
      %295 = vmatprep.subr.mxu0 0.0
      %296 = vmatpush1.msra.mxu0 0.0
      %297 = vmatprep.subr.mxu0 0.0
      %298 = vmatpush1.msra.mxu0 0.0
      %299 = vmatprep.subr.mxu0 0.0
      %300 = vmatpush1.msra.mxu0 0.0
      %301 = vmatprep.subr.mxu0 0.0
      %302 = vmatpush1.msra.mxu0 0.0
      %303 = vmatprep.subr.mxu0 0.0
      %304 = vmatpush1.msra.mxu0 0.0
      %305 = vmatprep.subr.mxu0 0.0
      %306 = vmatpush1.msra.mxu0 0.0
      %307 = vmatprep.subr.mxu0 0.0
      %308 = vmatpush1.msra.mxu0 0.0
      %309 = vmatprep.subr.mxu0 0.0
      %310 = vmatpush1.msra.mxu0 0.0
      %311 = vmatprep.mubr.f32.mxu0 0.0
      %312 = vmatmul.mubr.f32.gmra.mrb[0].mxu0 %v236
      %v313 = vpop.f32.mrb[0].mxu0
      %v314 = vadd.f32 %v217, %v313
      %v315 = vpop.f32.mrb[0].mxu0
      %316 = vmatprep.mubr.f32.mxu0 0.0
      %317 = vmatmul.mubr.f32.gmra.mrb[0].mxu0 %v239
      %v318 = vpop.f32.mrb[0].mxu0
      %v319 = vadd.f32 %v222, %v318
      %v320 = vpop.f32.mrb[0].mxu0
      %321 = vmatprep.mubr.f32.mxu0 0.0
      %322 = vmatmul.mubr.f32.gmra.mrb[0].mxu0 %v242
      %v323 = vpop.f32.mrb[0].mxu0
      %v324 = vadd.f32 %v227, %v323
      %v325 = vpop.f32.mrb[0].mxu0
      %326 = vmatprep.mubr.f32.mxu0 0.0
      %327 = vmatmul.mubr.f32.gmra.mrb[0].mxu0 %v245
      %v328 = vpop.f32.mrb[0].mxu0
      %v329 = vadd.f32 %v232, %v328
      %v330 = vpop.f32.mrb[0].mxu0
      %331 = vdwg.mxu0
      %v332 = vadd.f32 %v314, %v210
      %v333 = vadd.f32 %v319, %v211
      %v334 = vadd.f32 %v324, %v212
      %v335 = vadd.f32 %v329, %v213
      %vm336 = vcmask 130048
      %337 = vst.msk [vmem:[%s201] sm:$0xff] %vm336, %v332
      %338 = vst.msk [vmem:[%s201 + $0x8] sm:$0xff] %vm336, %v333
      %339 = vst.msk [vmem:[%s201 + $0x10] sm:$0xff] %vm336, %v334
      %340 = vst.msk [vmem:[%s201 + $0x18] sm:$0xff] %vm336, %v335
      %p341 = scmp.lt.s32.totalorder %s18, 1
      %s342 = scalar_select %p341, %s18, 1
      %p343 = scmp.lt.s32.totalorder %s19, 0
      %s344 = scalar_select %p343, %s19, 0
      %s345 = smul.addr %s342, 4
      %s346 = sadd.s32 %s344, %s345
      %s347 = smul.addr %s346, 8
      %s348 = scalar_lea.vmem %s3, %s347
      // Predicated region
      $region33: #{tpu_custom_call.1} parent=31 // pred_check
        %p349 = pneg %p116
      $region34: #{tpu_custom_call.1} parent=31 // pred_check_branch
        %351 = sbr.rel (%p349) target = $region36
      $region35: #{tpu_custom_call.1} parent=31 // pred_region
        _
      $region36: #{tpu_custom_call.1} parent=31 // pred_fallthru
        _
    $region32: #{tpu_custom_call.1} parent=5 // pred_fallthru
      _
    %p352 = scmp.le.s32.totalorder 2, %s9
    // Predicated region
    $region37: #{tpu_custom_call.1} parent=5 // pred_check
      %p353 = pneg %p352
    $region38: #{tpu_custom_call.1} parent=5 // pred_check_branch
      %355 = sbr.rel (%p353) target = $region40
    $region39: #{tpu_custom_call.1} parent=5 // pred_region
      %s356 = ssub.s32 %s9, 2
      // Predicated region
      $region41: #{tpu_custom_call.1} parent=39 // pred_check
        %p357 = pneg %p122
      $region42: #{tpu_custom_call.1} parent=39 // pred_check_branch
        %359 = sbr.rel (%p357) target = $region44
      $region43: #{tpu_custom_call.1} parent=39 // pred_region
        %p360 = scmp.lt.s32.totalorder %s20, 1
        %s361 = scalar_select %p360, %s20, 1
        %p362 = scmp.lt.s32.totalorder %s21, 0
        %s363 = scalar_select %p362, %s21, 0
        %s364 = smul.addr %s361, 4
        %s365 = sadd.s32 %s363, %s364
        %s366 = smul.addr %s365, 8
        %s367 = scalar_lea.vmem %s3, %s366
      $region44: #{tpu_custom_call.1} parent=39 // pred_fallthru
        _
    $region40: #{tpu_custom_call.1} parent=5 // pred_fallthru
      _
  $region6: #{tpu_custom_call.1} parent=0 // loop_footer
    %s13 = sadd.s32 1, %s9
  $region7: #{tpu_custom_call.1} parent=0 // loop_footer_branch
    %8 = sbr.rel target = $region3
  $region8: #{tpu_custom_call.1} parent=0 // loop_exit
    _

</llo_original>
